<compile_context>
chip_gen: v6e
topology: v6e:2x2x1
jax: 0.10.0
libtpu: 0.0.40
codegen_flags: <defaults>
</compile_context>

<pallas_src>
import functools

import jax
import jax.numpy as jnp
from jax.experimental import pallas as pl
from jax.experimental.pallas import tpu as pltpu

_LANES = 128
_SUBLANES = 8
_DEFAULT_BLOCK_ROWS = 1024  # 512 KiB f32 per plane per block


def _dropout_kernel(threshold, scale, seed_ref, zr_ref, zi_ref, or_ref, oi_ref):
    blk, lanes = zr_ref.shape
    row0 = pl.program_id(0) * blk

    # Global element index of every lane in this block.
    row = jax.lax.broadcasted_iota(jnp.int32, (blk, lanes), 0) + row0
    col = jax.lax.broadcasted_iota(jnp.int32, (blk, lanes), 1)
    cnt = (row * lanes + col).astype(jnp.uint32)

    # Counter-based PRNG: golden-ratio seed mix + murmur3 fmix32 finalizer.
    x = cnt + seed_ref[0].astype(jnp.uint32) * jnp.uint32(0x9E3779B9)
    x = x ^ (x >> 16)
    x = x * jnp.uint32(0x85EBCA6B)
    x = x ^ (x >> 13)
    x = x * jnp.uint32(0xC2B2AE35)
    x = x ^ (x >> 16)

    # Keep an element iff x >= p * 2^32  (P(keep) = 1 - p); scale survivors.
    mask = jnp.where(x >= jnp.uint32(threshold),
                     jnp.float32(scale), jnp.float32(0.0))

    # The same real-valued mask multiplies real and imaginary parts.
    or_ref[...] = mask * zr_ref[...]
    oi_ref[...] = mask * zi_ref[...]


def complex_dropout(z, p: float = 0.5, seed: int = 0, training: bool = True,
                    block_rows: int = _DEFAULT_BLOCK_ROWS):
    """Pallas implementation of torchcvnn's complex Dropout forward."""
    if (not training) or p == 0.0:
        return z  # identity, like the PyTorch module in eval mode
    if p >= 1.0:
        return jnp.zeros_like(z)  # torch dropout with p=1 zeroes everything

    orig_shape = z.shape
    orig_dtype = z.dtype
    zr = jnp.real(z).astype(jnp.float32).reshape(-1)
    zi = jnp.imag(z).astype(jnp.float32).reshape(-1)
    total = zr.shape[0]

    # Lane-dense (rows, 128) slab; rows rounded to a multiple of the block size
    # so the grid covers the slab exactly (padded tail is sliced off at the end).
    rows = pl.cdiv(total, _LANES)
    rows = pl.cdiv(rows, _SUBLANES) * _SUBLANES
    blk = min(int(block_rows), rows)
    blk = max(_SUBLANES, (blk // _SUBLANES) * _SUBLANES)
    rows = pl.cdiv(rows, blk) * blk
    padded = rows * _LANES
    if padded != total:
        zr = jnp.pad(zr, (0, padded - total))
        zi = jnp.pad(zi, (0, padded - total))
    zr2 = zr.reshape(rows, _LANES)
    zi2 = zi.reshape(rows, _LANES)

    seed_arr = jnp.asarray([seed], dtype=jnp.int32)
    threshold = min(int(round(float(p) * (2.0 ** 32))), 2 ** 32 - 1)
    scale = 1.0 / (1.0 - float(p))

    kernel = functools.partial(_dropout_kernel, threshold, scale)
    grid = (rows // blk,)

    out_r, out_i = pl.pallas_call(
        kernel,
        grid=grid,
        out_shape=(
            jax.ShapeDtypeStruct((rows, _LANES), jnp.float32),
            jax.ShapeDtypeStruct((rows, _LANES), jnp.float32),
        ),
        in_specs=[
            pl.BlockSpec(memory_space=pltpu.MemorySpace.SMEM),   # seed scalar
            pl.BlockSpec((blk, _LANES), lambda i: (i, 0)),        # Re(z)
            pl.BlockSpec((blk, _LANES), lambda i: (i, 0)),        # Im(z)
        ],
        out_specs=(
            pl.BlockSpec((blk, _LANES), lambda i: (i, 0)),
            pl.BlockSpec((blk, _LANES), lambda i: (i, 0)),
        ),
        compiler_params=pltpu.CompilerParams(
            dimension_semantics=("parallel",)),
    )(seed_arr, zr2, zi2)

    out = jax.lax.complex(out_r.reshape(-1)[:total], out_i.reshape(-1)[:total])
    return out.reshape(orig_shape).astype(orig_dtype)


if __name__ == "__main__":
    key = jax.random.PRNGKey(0)
    kr, ki = jax.random.split(key)
    B, C, H, W = 2, 4, 16, 16  # NCHW complex64, like the PyTorch module
    z = (jax.random.normal(kr, (B, C, H, W), dtype=jnp.float32)
         + 1j * jax.random.normal(ki, (B, C, H, W), dtype=jnp.float32)
         ).astype(jnp.complex64)

    p = 0.5
    out = jax.block_until_ready(complex_dropout(z, p=p, seed=1234, training=True))

    assert out.shape == z.shape and out.dtype == z.dtype
    # Survivors are scaled by exactly 1/(1-p); dropped entries are zero in both
    # parts (this also checks Re/Im share the mask).
    scale = 1.0 / (1.0 - p)
    kept = out != 0
    assert jnp.allclose(out[kept], z[kept] * scale, rtol=1e-5, atol=1e-5)
    # Drop fraction is roughly p (loose statistical bound for 2048 elements).
    drop_frac = float(jnp.mean((out == 0).astype(jnp.float32)))
    assert 0.35 < drop_frac < 0.65, drop_frac

    # Eval mode and p=0 are identities; p>=1 zeroes everything.
    assert jnp.array_equal(
        jax.block_until_ready(complex_dropout(z, p=p, training=False)), z)
    assert jnp.array_equal(
        jax.block_until_ready(complex_dropout(z, p=0.0, seed=7)), z)
    assert jnp.array_equal(
        jax.block_until_ready(complex_dropout(z, p=1.0, seed=7)),
        jnp.zeros_like(z))

    print("KERNEL_OK")
</pallas_src>

<mosaic_0001>
module attributes {stable_mosaic.version = 11 : i64} {
  func.func @_dropout_kernel(%arg0: i32, %arg1: memref<1xi32, #tpu.memory_space<smem>>, %arg2: memref<16x128xf32, #tpu.memory_space<vmem>>, %arg3: memref<16x128xf32, #tpu.memory_space<vmem>>, %arg4: memref<16x128xf32, #tpu.memory_space<vmem>>, %arg5: memref<16x128xf32, #tpu.memory_space<vmem>>) attributes {dimension_semantics = [#tpu.dimension_semantics<parallel>], iteration_bounds = array<i64: 1>, scalar_prefetch = 0 : i64, scratch_operands = 0 : i64, tpu.core_type = #tpu.core_type<tc>, window_params = [{transform_indices = @transform_0, window_bounds = array<i64: 1>}, {transform_indices = @transform_1, window_bounds = array<i64: 16, 128>}, {transform_indices = @transform_2, window_bounds = array<i64: 16, 128>}, {transform_indices = @transform_3, window_bounds = array<i64: 16, 128>}, {transform_indices = @transform_4, window_bounds = array<i64: 16, 128>}]} {
    %c16_i32 = arith.constant 16 : i32
    %0 = arith.muli %arg0, %c16_i32 : i32
    %1 = tpu.iota {dimensions = array<i32: 0>} : vector<16x128xi32>
    %2 = vector.broadcast %0 : i32 to vector<16x128xi32>
    %3 = arith.addi %1, %2 : vector<16x128xi32>
    %4 = tpu.iota {dimensions = array<i32: 1>} : vector<16x128xi32>
    %c128_i32 = arith.constant 128 : i32
    %5 = vector.broadcast %c128_i32 : i32 to vector<16x128xi32>
    %6 = arith.muli %3, %5 : vector<16x128xi32>
    %7 = arith.addi %6, %4 : vector<16x128xi32>
    %c0 = arith.constant 0 : index
    %8 = memref.load %arg1[%c0] : memref<1xi32, #tpu.memory_space<smem>>
    %c-1640531527_i32 = arith.constant -1640531527 : i32
    %9 = arith.muli %8, %c-1640531527_i32 : i32
    %10 = vector.broadcast %9 : i32 to vector<16x128xi32>
    %11 = arith.addi %7, %10 : vector<16x128xi32>
    %c16_i32_0 = arith.constant 16 : i32
    %12 = vector.broadcast %c16_i32_0 : i32 to vector<16x128xi32>
    %13 = arith.shrui %11, %12 : vector<16x128xi32>
    %14 = arith.xori %11, %13 : vector<16x128xi32>
    %c-2048144789_i32 = arith.constant -2048144789 : i32
    %15 = vector.broadcast %c-2048144789_i32 : i32 to vector<16x128xi32>
    %16 = arith.muli %14, %15 : vector<16x128xi32>
    %c13_i32 = arith.constant 13 : i32
    %17 = vector.broadcast %c13_i32 : i32 to vector<16x128xi32>
    %18 = arith.shrui %16, %17 : vector<16x128xi32>
    %19 = arith.xori %16, %18 : vector<16x128xi32>
    %c-1028477387_i32 = arith.constant -1028477387 : i32
    %20 = vector.broadcast %c-1028477387_i32 : i32 to vector<16x128xi32>
    %21 = arith.muli %19, %20 : vector<16x128xi32>
    %c16_i32_1 = arith.constant 16 : i32
    %22 = vector.broadcast %c16_i32_1 : i32 to vector<16x128xi32>
    %23 = arith.shrui %21, %22 : vector<16x128xi32>
    %24 = arith.xori %21, %23 : vector<16x128xi32>
    %c-2147483648_i32 = arith.constant -2147483648 : i32
    %25 = vector.broadcast %c-2147483648_i32 : i32 to vector<16x128xi32>
    %26 = arith.cmpi uge, %24, %25 : vector<16x128xi32>
    %cst = arith.constant 2.000000e+00 : f32
    %cst_2 = arith.constant 0.000000e+00 : f32
    %27 = vector.broadcast %cst : f32 to vector<16x128xf32>
    %28 = vector.broadcast %cst_2 : f32 to vector<16x128xf32>
    %29 = arith.select %26, %27, %28 : vector<16x128xi1>, vector<16x128xf32>
    %c0_3 = arith.constant 0 : index
    %c0_4 = arith.constant 0 : index
    %30 = vector.load %arg2[%c0_3, %c0_4] : memref<16x128xf32, #tpu.memory_space<vmem>>, vector<16x128xf32>
    %31 = arith.mulf %29, %30 : vector<16x128xf32>
    %c0_5 = arith.constant 0 : index
    %c0_6 = arith.constant 0 : index
    %32 = vector.load %arg4[%c0_5, %c0_6] : memref<16x128xf32, #tpu.memory_space<vmem>>, vector<16x128xf32>
    tpu.vector_store %arg4[%c0_5, %c0_6], %31 {strides = array<i32>} : memref<16x128xf32, #tpu.memory_space<vmem>>, vector<16x128xf32>,
    %c0_7 = arith.constant 0 : index
    %c0_8 = arith.constant 0 : index
    %33 = vector.load %arg3[%c0_7, %c0_8] : memref<16x128xf32, #tpu.memory_space<vmem>>, vector<16x128xf32>
    %34 = arith.mulf %29, %33 : vector<16x128xf32>
    %c0_9 = arith.constant 0 : index
    %c0_10 = arith.constant 0 : index
    %35 = vector.load %arg5[%c0_9, %c0_10] : memref<16x128xf32, #tpu.memory_space<vmem>>, vector<16x128xf32>
    tpu.vector_store %arg5[%c0_9, %c0_10], %34 {strides = array<i32>} : memref<16x128xf32, #tpu.memory_space<vmem>>, vector<16x128xf32>,
    return
  }
  func.func @transform_0(%arg0: i32) -> i32 {
    %c0_i32 = arith.constant 0 : i32
    %c0_i32_0 = arith.constant 0 : i32
    return %c0_i32 : i32
  }
  func.func @transform_1(%arg0: i32) -> (i32, i32) {
    %c0_i32 = arith.constant 0 : i32
    %c0_i32_0 = arith.constant 0 : i32
    return %arg0, %c0_i32 : i32, i32
  }
  func.func @transform_2(%arg0: i32) -> (i32, i32) {
    %c0_i32 = arith.constant 0 : i32
    %c0_i32_0 = arith.constant 0 : i32
    return %arg0, %c0_i32 : i32, i32
  }
  func.func @transform_3(%arg0: i32) -> (i32, i32) {
    %c0_i32 = arith.constant 0 : i32
    %c0_i32_0 = arith.constant 0 : i32
    return %arg0, %c0_i32 : i32, i32
  }
  func.func @transform_4(%arg0: i32) -> (i32, i32) {
    %c0_i32 = arith.constant 0 : i32
    %c0_i32_0 = arith.constant 0 : i32
    return %arg0, %c0_i32 : i32, i32
  }
}

</mosaic_0001>

<llo_original>
// kernel: tpu_custom_call.1
$region0: #{tpu_custom_call.1}
  #allocation0 [shape = 'u32[]', space=smem, size = 0x4, offset = 0x4, fixed_abs, tag = 'smem constant byte address 0x4 - core index']
  #allocation1 [shape = 'u32[144,128]{1,0:T(1,128)}', space=vmem, size = 0x12000, scoped, tag = 'internal scratch']
  #allocation2 [shape = 's32[1]{0:T(128)S(6)}', space=smem, size = 0x200, scoped, tag = 'scoped memory for tpu_custom_call.1']
  %s0 = inlined_call_operand.<no memory space> [shape: s32[1], index: 0, kind: input, shape index: {}]
  %s1 = inlined_call_operand.hbm [shape: f32[16,128], index: 1, kind: input, shape index: {}]
  %s2 = inlined_call_operand.hbm [shape: f32[16,128], index: 2, kind: input, shape index: {}]
  %s3 = inlined_call_operand.hbm [shape: f32[16,128], index: 3, kind: output, shape index: {0}]
  %s4 = inlined_call_operand.hbm [shape: f32[16,128], index: 4, kind: output, shape index: {1}]
  %5 = xla_tuple %s3, %s4
  %s6 = sld [smem:[#allocation0]]
  $region38: #{tpu_custom_call.1} parent=0
    _
  %s8 = ssub.s32 1, %s6
  %s9 = scalar_select 0, %s8, %s6
  %10 = sst [smem:[#allocation2]] %s0
  $region1: #{tpu_custom_call.1} parent=0
    #allocation3 [shape = 'u8[8192]{0}', space=vmem, size = 0x2000, scoped, tag = 'input window, operand 1, single buffered']
    #allocation4 [shape = 's32[1]{0}', space=sflag, size = 0x4, scoped, tag = 'scoped memory for tpu_custom_call.1']
    #allocation5 [shape = 's32[1]{0}', space=sflag, size = 0x4, scoped, tag = 'scoped memory for tpu_custom_call.1']
    #allocation6 [shape = 'u8[8192]{0}', space=vmem, size = 0x2000, scoped, tag = 'input window, operand 2, single buffered']
    #allocation7 [shape = 's32[1]{0}', space=sflag, size = 0x4, scoped, tag = 'scoped memory for tpu_custom_call.1']
    #allocation8 [shape = 'u8[8192]{0}', space=vmem, size = 0x2000, scoped, tag = 'output window, operand 0, single buffered']
    #allocation9 [shape = 'u8[8192]{0}', space=vmem, size = 0x2000, scoped, tag = 'output window, operand 1, single buffered']
    #allocation10 [shape = 's32[1]{0}', space=sflag, size = 0x4, scoped, tag = 'scoped memory for tpu_custom_call.1']
    %11 = vsyncpa [#allocation4], 0
    %12 = vsyncpa [#allocation7], 0
    %13 = vsyncpa [#allocation5], 0
    %14 = vsyncpa [#allocation10], 0
    // Predicated region
    $region2: #{tpu_custom_call.1} parent=1 // pred_check
      _
    $region3: #{tpu_custom_call.1} parent=1 // pred_check_branch
      %16 = sbr.rel (0) target = $region5
    $region4: #{tpu_custom_call.1} parent=1 // pred_region
      _
    $region5: #{tpu_custom_call.1} parent=1 // pred_fallthru
      _
    // Predicated region
    $region6: #{tpu_custom_call.1} parent=1 // pred_check
      _
    $region7: #{tpu_custom_call.1} parent=1 // pred_check_branch
      %18 = sbr.rel (0) target = $region9
    $region8: #{tpu_custom_call.1} parent=1 // pred_region
      %s20 = ssub.s32 256, 256
      %21 = vsyncadd [#allocation4], %s20
      %s22 = sshll.u32 [#allocation3], 4
      %s23 = int_to_ptr.vmem [resolvable:$true] %s22
      %28 = dma.hbm_to_vmem [thread:$0]  %s1, 256, %s23, [#allocation4], 128, 128, 8
    $region9: #{tpu_custom_call.1} parent=1 // pred_fallthru
      _
    // Predicated region
    $region10: #{tpu_custom_call.1} parent=1 // pred_check
      _
    $region11: #{tpu_custom_call.1} parent=1 // pred_check_branch
      %30 = sbr.rel (0) target = $region13
    $region12: #{tpu_custom_call.1} parent=1 // pred_region
      %s32 = ssub.s32 256, 256
      %33 = vsyncadd [#allocation7], %s32
      %s34 = sshll.u32 [#allocation6], 4
      %s35 = int_to_ptr.vmem [resolvable:$true] %s34
      %40 = dma.hbm_to_vmem [thread:$0]  %s2, 256, %s35, [#allocation7], 128, 128, 8
    $region13: #{tpu_custom_call.1} parent=1 // pred_fallthru
      _
    // Predicated region
    $region14: #{tpu_custom_call.1} parent=1 // pred_check
      _
    $region15: #{tpu_custom_call.1} parent=1 // pred_check_branch
      %42 = sbr.rel (0) target = $region17
    $region16: #{tpu_custom_call.1} parent=1 // pred_region
      %43 = dma.done [#allocation4], 256
    $region17: #{tpu_custom_call.1} parent=1 // pred_fallthru
      _
    // Predicated region
    $region18: #{tpu_custom_call.1} parent=1 // pred_check
      _
    $region19: #{tpu_custom_call.1} parent=1 // pred_check_branch
      %45 = sbr.rel (0) target = $region21
    $region20: #{tpu_custom_call.1} parent=1 // pred_region
      %46 = dma.done [#allocation7], 256
    $region21: #{tpu_custom_call.1} parent=1 // pred_fallthru
      _
    %s47 = smul.u32 0, 16
    %v48 = vlaneseq
    %v49 = vshrl.u32 %v48, 7
    %v50 = vadd.s32 %v49, 8
    %v51 = vstv %s47
    %v52 = vadd.s32 %v49, %v51
    %v53 = vadd.s32 %v50, %v51
    %v54 = vlaneseq
    %v55 = vand.u32 %v54, 127
    %v56 = vmul.u32 %v52, 128
    %v57 = vmul.u32 %v53, 128
    %v58 = vadd.s32 %v56, %v55
    %v59 = vadd.s32 %v57, %v55
    %s60 = sld [smem:[#allocation2]]
    %s61 = smul.u32 %s60, 2654435769
    %v62 = vstv %s61
    %v63 = vadd.s32 %v58, %v62
    %v64 = vadd.s32 %v59, %v62
    %v65 = vshrl.u32 %v63, 16
    %v66 = vshrl.u32 %v64, 16
    %v67 = vxor.u32 %v63, %v65
    %v68 = vxor.u32 %v64, %v66
    %v69 = vmul.u32 %v67, 2246822507
    %v70 = vmul.u32 %v68, 2246822507
    %v71 = vshrl.u32 %v69, 13
    %v72 = vshrl.u32 %v70, 13
    %v73 = vxor.u32 %v69, %v71
    %v74 = vxor.u32 %v70, %v72
    %v75 = vmul.u32 %v73, 3266489909
    %v76 = vmul.u32 %v74, 3266489909
    %v77 = vshrl.u32 %v75, 16
    %v78 = vshrl.u32 %v76, 16
    %v79 = vxor.u32 %v75, %v77
    %v80 = vxor.u32 %v76, %v78
    %vm81 = vcmp.ge.u32.totalorder %v79, 2147483648
    %vm82 = vcmp.ge.u32.totalorder %v80, 2147483648
    %v83 = vsel %vm81, 2.0, 0.0
    %v84 = vsel %vm82, 2.0, 0.0
    %v85 = vld [vmem:[#allocation3] sm:$0xff]
    %v86 = vld [vmem:[#allocation3 + $0x8] sm:$0xff]
    %v87 = vmul.f32 %v83, %v85
    %v88 = vmul.f32 %v84, %v86
    %89 = vst [vmem:[#allocation8] sm:$0xff] %v87
    %90 = vst [vmem:[#allocation8 + $0x8] sm:$0xff] %v88
    %v91 = vld [vmem:[#allocation6] sm:$0xff]
    %v92 = vld [vmem:[#allocation6 + $0x8] sm:$0xff]
    %v93 = vmul.f32 %v83, %v91
    %v94 = vmul.f32 %v84, %v92
    %95 = vst [vmem:[#allocation9] sm:$0xff] %v93
    %96 = vst [vmem:[#allocation9 + $0x8] sm:$0xff] %v94
    // Predicated region
    $region22: #{tpu_custom_call.1} parent=1 // pred_check
      _
    $region23: #{tpu_custom_call.1} parent=1 // pred_check_branch
      %98 = sbr.rel (0) target = $region25
    $region24: #{tpu_custom_call.1} parent=1 // pred_region
      %s100 = ssub.s32 256, 256
      %101 = vsyncadd [#allocation5], %s100
      %s102 = sshll.u32 [#allocation8], 4
      %s103 = int_to_ptr.vmem [resolvable:$true] %s102
      %108 = dma.vmem_to_hbm [thread:$0]  %s103, 256, %s3, [#allocation5], 128, 128, 8
    $region25: #{tpu_custom_call.1} parent=1 // pred_fallthru
      _
    // Predicated region
    $region26: #{tpu_custom_call.1} parent=1 // pred_check
      _
    $region27: #{tpu_custom_call.1} parent=1 // pred_check_branch
      %110 = sbr.rel (0) target = $region29
    $region28: #{tpu_custom_call.1} parent=1 // pred_region
      %s112 = ssub.s32 256, 256
      %113 = vsyncadd [#allocation10], %s112
      %s114 = sshll.u32 [#allocation9], 4
      %s115 = int_to_ptr.vmem [resolvable:$true] %s114
      %120 = dma.vmem_to_hbm [thread:$0]  %s115, 256, %s4, [#allocation10], 128, 128, 8
    $region29: #{tpu_custom_call.1} parent=1 // pred_fallthru
      _
    // Predicated region
    $region30: #{tpu_custom_call.1} parent=1 // pred_check
      _
    $region31: #{tpu_custom_call.1} parent=1 // pred_check_branch
      %122 = sbr.rel (0) target = $region33
    $region32: #{tpu_custom_call.1} parent=1 // pred_region
      %123 = dma.done [#allocation5], 256
    $region33: #{tpu_custom_call.1} parent=1 // pred_fallthru
      _
    // Predicated region
    $region34: #{tpu_custom_call.1} parent=1 // pred_check
      _
    $region35: #{tpu_custom_call.1} parent=1 // pred_check_branch
      %125 = sbr.rel (0) target = $region37
    $region36: #{tpu_custom_call.1} parent=1 // pred_region
      %126 = dma.done [#allocation10], 256
    $region37: #{tpu_custom_call.1} parent=1 // pred_fallthru
      _
    %127 = vsyncpa [#allocation4], 1
    %128 = vsyncpa [#allocation7], 1
    %129 = vsyncpa [#allocation5], 1
    %130 = vsyncpa [#allocation10], 1

</llo_original>
